<compile_context>
chip_gen: v5e
topology: v5e:2x2
jax: 0.10.0
libtpu: 0.0.40
codegen_flags: <defaults>
</compile_context>

<pallas_src>
import numpy as np
import jax
import jax.numpy as jnp
from jax.experimental import pallas as pl
from jax.experimental.pallas import tpu as pltpu


def _nnb_kernel(x_ref, w1_ref, b1_ref, w2_ref, b2_ref,
                exp_ref, slexp_ref, grp_ref, g_ref, out_ref):
    x = x_ref[...]                                               # (tb, 2S) f32

    # --- RBM / MLP hot path: Linear -> ReLU -> Linear on the MXU (f32) ---
    h = jnp.dot(x, w1_ref[...], preferred_element_type=jnp.float32) + b1_ref[...]
    h = jnp.maximum(h, 0.0)
    # W2/b2 are N-fold column-tiled on the host, so the second Linear emits
    # the replicated flat layout directly (lane-dense over rep_dim = N*2S*N):
    #   o_rep[b, n*2S*N + s*N + k] = out[b, s, k]
    o_rep = jnp.dot(h, w2_ref[...], preferred_element_type=jnp.float32) + b2_ref[...]

    # --- occupancy / exclusive-prefix-rank replicated onto the same axis ---
    # 0/1 and small-integer matrices: bf16 operands are bit-exact here
    # (values 0/1, sums <= 2S) and use the native bf16 MXU path; f32 acc.
    x_bf = x.astype(jnp.bfloat16)
    x_rep = jnp.dot(x_bf, exp_ref[...], preferred_element_type=jnp.float32)
    rank_rep = jnp.dot(x_bf, slexp_ref[...], preferred_element_type=jnp.float32)

    # --- single exact-integer equality mask + ONE K=rep_dim gather matmul ---
    # masked[b, n*2S*N + s*N + k] = [rank(b,s)==n] * x[b,s] * out[b,s,k]
    masked = jnp.where(rank_rep == grp_ref[...], x_rep * o_rep, 0.0)
    out_ref[...] = jnp.dot(masked, g_ref[...], preferred_element_type=jnp.float32)


def _det_from_flat(mat_flat, n):
    """det of the (B, n, n) matrices stored flat in the first n*n lanes of
    mat_flat. Closed-form expansion for n <= 4: pure elementwise math that
    XLA fuses with the lane slices (no latency-bound batched LU)."""
    a = lambda i, j: mat_flat[:, i * n + j]
    if n == 1:
        return a(0, 0)
    if n == 2:
        return a(0, 0) * a(1, 1) - a(0, 1) * a(1, 0)
    if n == 3:
        return (a(0, 0) * (a(1, 1) * a(2, 2) - a(1, 2) * a(2, 1))
                - a(0, 1) * (a(1, 0) * a(2, 2) - a(1, 2) * a(2, 0))
                + a(0, 2) * (a(1, 0) * a(2, 1) - a(1, 1) * a(2, 0)))
    if n == 4:
        # Laplace expansion along rows {0,1} against complementary minors of
        # rows {2,3} (6 terms, fully vectorized over the batch).
        def m2(r0, r1, c0, c1):
            return a(r0, c0) * a(r1, c1) - a(r0, c1) * a(r1, c0)
        return (m2(0, 1, 0, 1) * m2(2, 3, 2, 3)
                - m2(0, 1, 0, 2) * m2(2, 3, 1, 3)
                + m2(0, 1, 0, 3) * m2(2, 3, 1, 2)
                + m2(0, 1, 1, 2) * m2(2, 3, 0, 3)
                - m2(0, 1, 1, 3) * m2(2, 3, 0, 2)
                + m2(0, 1, 2, 3) * m2(2, 3, 0, 1))
    # TODO(synk): general-N torch.det (pivoted LU on tiny NxN matrices) has no
    # clean closed-form / Pallas vector equivalent; fall back to batched LU.
    return jnp.linalg.det(mat_flat[:, :n * n].reshape(-1, n, n))


def spinsum_nnb_forward(x, w1, b1, w2, b2, num_fillings, *, tb=256):
    B, two_s = x.shape
    n_fill = int(num_fillings[0] + num_fillings[1])
    H = w1.shape[1]
    out_dim = two_s * n_fill            # columns of the original W2 (= 2S*N)
    rep_dim = n_fill * out_dim          # replicated flat axis (= N*2S*N)
    nn = n_fill * n_fill
    out_cols = pl.cdiv(nn, 128) * 128   # lane-dense output width

    # --- hoisted, grid-resident constants (built once on the host) ---
    # strictly-upper ones: rank[b, s] = sum_t x[b, t] * [t < s]
    upper = np.triu(np.ones((two_s, two_s), np.float32), k=1)
    # site -> flat-column expansion: expand[s, s*N + k] = 1
    expand_np = np.zeros((two_s, out_dim), np.float32)
    for s in range(two_s):
        expand_np[s, s * n_fill:(s + 1) * n_fill] = 1.0
    slexp_np = (upper @ expand_np).astype(np.float32)
    # N-fold column tiling so the kernel's occupancy/rank dots are lane-dense
    # over rep_dim; stored bf16 (0/1 and integers <= 2S -> bit-exact).
    expand_rep = jnp.asarray(np.tile(expand_np, (1, n_fill)), dtype=jnp.bfloat16)
    slexp_rep = jnp.asarray(np.tile(slexp_np, (1, n_fill)), dtype=jnp.bfloat16)
    # per-lane group index: group[0, n*out_dim + j] = n
    group_row = jnp.asarray(
        np.repeat(np.arange(n_fill, dtype=np.float32), out_dim)[None, :])
    # single gather/group-sum matrix: gmat[n*out_dim + s*N + k, n*N + k] = 1,
    # columns padded to 128 so the final store is a full-lane unmasked vst.
    # NOTE(v7x): gmat is (N^2*2S, ceil(N^2/128)*128) f32; at production sizes
    # (e.g. 2S=64, N=16 -> ~16 MiB x2 buffers) keep it bf16 / single-buffered
    # or stream per-n slabs over an extra grid axis to stay inside 64 MiB VMEM.
    gmat_np = np.zeros((rep_dim, out_cols), np.float32)
    for n in range(n_fill):
        for j in range(out_dim):
            gmat_np[n * out_dim + j, n * n_fill + (j % n_fill)] = 1.0
    gmat = jnp.asarray(gmat_np)

    # N-fold column-tiled second Linear so o_rep comes straight off the MXU.
    w2_rep = jnp.tile(w2, (1, n_fill))
    b2_rep = jnp.tile(b2, (1, n_fill))

    # pad the batch to a multiple of the tile; padded rows produce all-zero
    # matrices and are sliced off before the determinant.
    Bp = pl.cdiv(B, tb) * tb
    x_p = jnp.pad(x, ((0, Bp - B), (0, 0))) if Bp != B else x

    mat_flat = pl.pallas_call(
        _nnb_kernel,
        out_shape=jax.ShapeDtypeStruct((Bp, out_cols), jnp.float32),
        grid_spec=pltpu.PrefetchScalarGridSpec(
            num_scalar_prefetch=0,
            grid=(Bp // tb,),
            in_specs=[
                pl.BlockSpec((tb, two_s), lambda i: (i, 0)),         # x (batch tiled)
                pl.BlockSpec((two_s, H), lambda i: (0, 0)),          # W1 (resident)
                pl.BlockSpec((1, H), lambda i: (0, 0)),              # b1
                pl.BlockSpec((H, rep_dim), lambda i: (0, 0)),        # W2 (N-tiled)
                pl.BlockSpec((1, rep_dim), lambda i: (0, 0)),        # b2 (N-tiled)
                pl.BlockSpec((two_s, rep_dim), lambda i: (0, 0)),    # expand (bf16)
                pl.BlockSpec((two_s, rep_dim), lambda i: (0, 0)),    # slexp  (bf16)
                pl.BlockSpec((1, rep_dim), lambda i: (0, 0)),        # group index row
                pl.BlockSpec((rep_dim, out_cols), lambda i: (0, 0)), # gmat
            ],
            out_specs=pl.BlockSpec((tb, out_cols), lambda i: (i, 0)),
        ),
        compiler_params=pltpu.CompilerParams(
            dimension_semantics=("parallel",),
            # tiny footprint here; set explicitly so larger production W2 /
            # gmat / tb sizes don't trip v5e's 16 MiB scoped-VMEM default.
            vmem_limit_bytes=32 * 1024 * 1024,
        ),
    )(x_p, w1, b1, w2_rep, b2_rep, expand_rep, slexp_rep, group_row, gmat)

    return _det_from_flat(mat_flat[:B], n_fill)


def reference_forward(x, w1, b1, w2, b2, n_fill):
    """Pure-JAX reference mirroring the PyTorch forward (float32)."""
    hp = jax.lax.Precision.HIGHEST
    h = jnp.maximum(jnp.dot(x, w1, precision=hp) + b1, 0.0)
    out = jnp.dot(h, w2, precision=hp) + b2
    B, two_s = x.shape
    out = out.reshape(B, two_s, n_fill)
    xn = np.asarray(x)
    cols = np.stack([np.nonzero(xn[i] == 1)[0] for i in range(B)])  # (B, N)
    mats = out[np.arange(B)[:, None], cols]                         # (B, N, N)
    return jnp.linalg.det(mats)


if __name__ == "__main__":
    S = 8                       # sys_size
    H = 32                      # hidden_size
    num_fillings = [2, 2]
    N = sum(num_fillings)
    B = 512                     # with tb=128 -> grid=(4,): >=2 steps per v7x TC
    two_s = 2 * S
    out_dim = two_s * N

    key = jax.random.PRNGKey(0)
    k_in, k_w1, k_b1, k_w2, k_b2 = jax.random.split(key, 5)

    # deterministic parameter init (uniform +-1/sqrt(fan_in), like nn.Linear)
    lim1 = 1.0 / np.sqrt(two_s)
    lim2 = 1.0 / np.sqrt(H)
    w1 = jax.random.uniform(k_w1, (two_s, H), jnp.float32, -lim1, lim1)
    b1 = jax.random.uniform(k_b1, (1, H), jnp.float32, -lim1, lim1)
    w2 = jax.random.uniform(k_w2, (H, out_dim), jnp.float32, -lim2, lim2)
    b2 = jax.random.uniform(k_b2, (1, out_dim), jnp.float32, -lim2, lim2)

    # configurations with exactly N occupied sites (value 1) per sample
    scores = jax.random.uniform(k_in, (B, two_s))
    occupied = jnp.argsort(scores, axis=1)[:, :N]
    x = jnp.zeros((B, two_s), jnp.float32).at[
        jnp.arange(B)[:, None], occupied].set(1.0)
    assert int(jnp.sum(x[0] > 0)) == N    # mirrors the torch assert

    det = spinsum_nnb_forward(x, w1, b1, w2, b2, num_fillings, tb=128)
    det = jax.block_until_ready(det)

    det_ref = reference_forward(x, w1, b1, w2, b2, N)
    np.testing.assert_allclose(np.asarray(det), np.asarray(det_ref),
                               rtol=2e-3, atol=2e-5)
    print("KERNEL_OK")
</pallas_src>

<mosaic_0001>
module attributes {stable_mosaic.version = 11 : i64} {
  func.func @_nnb_kernel(%arg0: i32, %arg1: memref<128x16xf32, #tpu.memory_space<vmem>>, %arg2: memref<16x32xf32, #tpu.memory_space<vmem>>, %arg3: memref<1x32xf32, #tpu.memory_space<vmem>>, %arg4: memref<32x256xf32, #tpu.memory_space<vmem>>, %arg5: memref<1x256xf32, #tpu.memory_space<vmem>>, %arg6: memref<16x256xbf16, #tpu.memory_space<vmem>>, %arg7: memref<16x256xbf16, #tpu.memory_space<vmem>>, %arg8: memref<1x256xf32, #tpu.memory_space<vmem>>, %arg9: memref<256x128xf32, #tpu.memory_space<vmem>>, %arg10: memref<128x128xf32, #tpu.memory_space<vmem>>) attributes {dimension_semantics = [#tpu.dimension_semantics<parallel>], iteration_bounds = array<i64: 4>, scalar_prefetch = 0 : i64, scratch_operands = 0 : i64, tpu.core_type = #tpu.core_type<tc>, window_params = [{transform_indices = @transform_0, window_bounds = array<i64: 128, 16>}, {pipeline_mode = #tpu.pipeline_mode<synchronous>, transform_indices = @transform_1, window_bounds = array<i64: 16, 32>}, {pipeline_mode = #tpu.pipeline_mode<synchronous>, transform_indices = @transform_2, window_bounds = array<i64: 1, 32>}, {pipeline_mode = #tpu.pipeline_mode<synchronous>, transform_indices = @transform_3, window_bounds = array<i64: 32, 256>}, {pipeline_mode = #tpu.pipeline_mode<synchronous>, transform_indices = @transform_4, window_bounds = array<i64: 1, 256>}, {pipeline_mode = #tpu.pipeline_mode<synchronous>, transform_indices = @transform_5, window_bounds = array<i64: 16, 256>}, {pipeline_mode = #tpu.pipeline_mode<synchronous>, transform_indices = @transform_6, window_bounds = array<i64: 16, 256>}, {pipeline_mode = #tpu.pipeline_mode<synchronous>, transform_indices = @transform_7, window_bounds = array<i64: 1, 256>}, {pipeline_mode = #tpu.pipeline_mode<synchronous>, transform_indices = @transform_8, window_bounds = array<i64: 256, 128>}, {transform_indices = @transform_9, window_bounds = array<i64: 128, 128>}]} {
    %c0 = arith.constant 0 : index
    %c0_0 = arith.constant 0 : index
    %0 = vector.load %arg1[%c0, %c0_0] : memref<128x16xf32, #tpu.memory_space<vmem>>, vector<128x16xf32>
    %c0_1 = arith.constant 0 : index
    %c0_2 = arith.constant 0 : index
    %1 = vector.load %arg2[%c0_1, %c0_2] : memref<16x32xf32, #tpu.memory_space<vmem>>, vector<16x32xf32>
    %cst = arith.constant dense<0.000000e+00> : vector<128x32xf32>
    %2 = tpu.matmul %0, %1, %cst {dimension_numbers = #tpu.dot_dimension_numbers<[1], [0], [0], [1], [0, 0, 1, 1], [], []>} : vector<128x16xf32>, vector<16x32xf32>, vector<128x32xf32> -> vector<128x32xf32>
    %c0_3 = arith.constant 0 : index
    %c0_4 = arith.constant 0 : index
    %3 = vector.load %arg3[%c0_3, %c0_4] : memref<1x32xf32, #tpu.memory_space<vmem>>, vector<1x32xf32>
    %4 = vector.broadcast %3 : vector<1x32xf32> to vector<128x32xf32>
    %5 = arith.addf %2, %4 : vector<128x32xf32>
    %cst_5 = arith.constant 0.000000e+00 : f32
    %6 = vector.broadcast %cst_5 : f32 to vector<128x32xf32>
    %7 = arith.maximumf %5, %6 : vector<128x32xf32>
    %c0_6 = arith.constant 0 : index
    %c0_7 = arith.constant 0 : index
    %8 = vector.load %arg4[%c0_6, %c0_7] : memref<32x256xf32, #tpu.memory_space<vmem>>, vector<32x256xf32>
    %cst_8 = arith.constant dense<0.000000e+00> : vector<128x256xf32>
    %9 = tpu.matmul %7, %8, %cst_8 {dimension_numbers = #tpu.dot_dimension_numbers<[1], [0], [0], [1], [0, 0, 1, 1], [], []>} : vector<128x32xf32>, vector<32x256xf32>, vector<128x256xf32> -> vector<128x256xf32>
    %c0_9 = arith.constant 0 : index
    %c0_10 = arith.constant 0 : index
    %10 = vector.load %arg5[%c0_9, %c0_10] : memref<1x256xf32, #tpu.memory_space<vmem>>, vector<1x256xf32>
    %11 = vector.broadcast %10 : vector<1x256xf32> to vector<128x256xf32>
    %12 = arith.addf %9, %11 : vector<128x256xf32>
    %13 = arith.truncf %0 : vector<128x16xf32> to vector<128x16xbf16>
    %c0_11 = arith.constant 0 : index
    %c0_12 = arith.constant 0 : index
    %14 = vector.load %arg6[%c0_11, %c0_12] : memref<16x256xbf16, #tpu.memory_space<vmem>>, vector<16x256xbf16>
    %cst_13 = arith.constant dense<0.000000e+00> : vector<128x256xf32>
    %15 = tpu.matmul %13, %14, %cst_13 {dimension_numbers = #tpu.dot_dimension_numbers<[1], [0], [0], [1], [0, 0, 1, 1], [], []>} : vector<128x16xbf16>, vector<16x256xbf16>, vector<128x256xf32> -> vector<128x256xf32>
    %c0_14 = arith.constant 0 : index
    %c0_15 = arith.constant 0 : index
    %16 = vector.load %arg7[%c0_14, %c0_15] : memref<16x256xbf16, #tpu.memory_space<vmem>>, vector<16x256xbf16>
    %cst_16 = arith.constant dense<0.000000e+00> : vector<128x256xf32>
    %17 = tpu.matmul %13, %16, %cst_16 {dimension_numbers = #tpu.dot_dimension_numbers<[1], [0], [0], [1], [0, 0, 1, 1], [], []>} : vector<128x16xbf16>, vector<16x256xbf16>, vector<128x256xf32> -> vector<128x256xf32>
    %c0_17 = arith.constant 0 : index
    %c0_18 = arith.constant 0 : index
    %18 = vector.load %arg8[%c0_17, %c0_18] : memref<1x256xf32, #tpu.memory_space<vmem>>, vector<1x256xf32>
    %19 = vector.broadcast %18 : vector<1x256xf32> to vector<128x256xf32>
    %20 = arith.cmpf oeq, %17, %19 : vector<128x256xf32>
    %21 = arith.mulf %15, %12 : vector<128x256xf32>
    %cst_19 = arith.constant 0.000000e+00 : f32
    %22 = vector.broadcast %cst_19 : f32 to vector<128x256xf32>
    %23 = arith.select %20, %21, %22 : vector<128x256xi1>, vector<128x256xf32>
    %c0_20 = arith.constant 0 : index
    %c0_21 = arith.constant 0 : index
    %24 = vector.load %arg9[%c0_20, %c0_21] : memref<256x128xf32, #tpu.memory_space<vmem>>, vector<256x128xf32>
    %cst_22 = arith.constant dense<0.000000e+00> : vector<128x128xf32>
    %25 = tpu.matmul %23, %24, %cst_22 {dimension_numbers = #tpu.dot_dimension_numbers<[1], [0], [0], [1], [0, 0, 1, 1], [], []>} : vector<128x256xf32>, vector<256x128xf32>, vector<128x128xf32> -> vector<128x128xf32>
    %c0_23 = arith.constant 0 : index
    %c0_24 = arith.constant 0 : index
    %26 = vector.load %arg10[%c0_23, %c0_24] : memref<128x128xf32, #tpu.memory_space<vmem>>, vector<128x128xf32>
    tpu.vector_store %arg10[%c0_23, %c0_24], %25 {strides = array<i32>} : memref<128x128xf32, #tpu.memory_space<vmem>>, vector<128x128xf32>,
    return
  }
  func.func @transform_0(%arg0: i32) -> (i32, i32) {
    %c0_i32 = arith.constant 0 : i32
    %c0_i32_0 = arith.constant 0 : i32
    return %arg0, %c0_i32 : i32, i32
  }
  func.func @transform_1(%arg0: i32) -> (i32, i32) {
    %c0_i32 = arith.constant 0 : i32
    %c0_i32_0 = arith.constant 0 : i32
    %c0_i32_1 = arith.constant 0 : i32
    return %c0_i32, %c0_i32_0 : i32, i32
  }
  func.func @transform_2(%arg0: i32) -> (i32, i32) {
    %c0_i32 = arith.constant 0 : i32
    %c0_i32_0 = arith.constant 0 : i32
    %c0_i32_1 = arith.constant 0 : i32
    return %c0_i32, %c0_i32_0 : i32, i32
  }
  func.func @transform_3(%arg0: i32) -> (i32, i32) {
    %c0_i32 = arith.constant 0 : i32
    %c0_i32_0 = arith.constant 0 : i32
    %c0_i32_1 = arith.constant 0 : i32
    return %c0_i32, %c0_i32_0 : i32, i32
  }
  func.func @transform_4(%arg0: i32) -> (i32, i32) {
    %c0_i32 = arith.constant 0 : i32
    %c0_i32_0 = arith.constant 0 : i32
    %c0_i32_1 = arith.constant 0 : i32
    return %c0_i32, %c0_i32_0 : i32, i32
  }
  func.func @transform_5(%arg0: i32) -> (i32, i32) {
    %c0_i32 = arith.constant 0 : i32
    %c0_i32_0 = arith.constant 0 : i32
    %c0_i32_1 = arith.constant 0 : i32
    return %c0_i32, %c0_i32_0 : i32, i32
  }
  func.func @transform_6(%arg0: i32) -> (i32, i32) {
    %c0_i32 = arith.constant 0 : i32
    %c0_i32_0 = arith.constant 0 : i32
    %c0_i32_1 = arith.constant 0 : i32
    return %c0_i32, %c0_i32_0 : i32, i32
  }
  func.func @transform_7(%arg0: i32) -> (i32, i32) {
    %c0_i32 = arith.constant 0 : i32
    %c0_i32_0 = arith.constant 0 : i32
    %c0_i32_1 = arith.constant 0 : i32
    return %c0_i32, %c0_i32_0 : i32, i32
  }
  func.func @transform_8(%arg0: i32) -> (i32, i32) {
    %c0_i32 = arith.constant 0 : i32
    %c0_i32_0 = arith.constant 0 : i32
    %c0_i32_1 = arith.constant 0 : i32
    return %c0_i32, %c0_i32_0 : i32, i32
  }
  func.func @transform_9(%arg0: i32) -> (i32, i32) {
    %c0_i32 = arith.constant 0 : i32
    %c0_i32_0 = arith.constant 0 : i32
    return %arg0, %c0_i32 : i32, i32
  }
}

</mosaic_0001>

<llo_original>
// kernel: tpu_custom_call.1
$region0: #{tpu_custom_call.1}
  #allocation0 [shape = 'u32[]', space=smem, size = 0x4, offset = 0x4, fixed_abs, tag = 'smem constant byte address 0x4 - core index']
  #allocation1 [shape = 'u32[72,128]{1,0:T(1,128)}', space=vmem, size = 0x9000, scoped, tag = 'internal scratch']
  %s0 = inlined_call_operand.vmem [shape: f32[512,16], index: 0, kind: input, shape index: {}]
  %s1 = inlined_call_operand.vmem [shape: f32[16,32], index: 1, kind: input, shape index: {}]
  %s2 = inlined_call_operand.vmem [shape: f32[1,32], index: 2, kind: input, shape index: {}]
  %s3 = inlined_call_operand.vmem [shape: f32[32,256], index: 3, kind: input, shape index: {}]
  %s4 = inlined_call_operand.vmem [shape: f32[1,256], index: 4, kind: input, shape index: {}]
  %s5 = inlined_call_operand.vmem [shape: bf16[16,256], index: 5, kind: input, shape index: {}]
  %s6 = inlined_call_operand.vmem [shape: bf16[16,256], index: 6, kind: input, shape index: {}]
  %s7 = inlined_call_operand.vmem [shape: f32[1,256], index: 7, kind: input, shape index: {}]
  %s8 = inlined_call_operand.vmem [shape: f32[256,128], index: 8, kind: input, shape index: {}]
  %s9 = inlined_call_operand.hbm [shape: f32[512,128], index: 9, kind: output, shape index: {}]
  %s10 = sld [smem:[#allocation0]]
  $region69: #{tpu_custom_call.1} parent=0
    _
  %s12 = ssub.s32 1, %s10
  %s13 = scalar_select 0, %s12, %s10
  $region1: #{tpu_custom_call.1} parent=0
    #allocation2 [shape = 'u8[131072]{0}', space=vmem, size = 0x20000, scoped, tag = 'output window, operand 0']
    #allocation3 [shape = 's32[2]{0}', space=sflag, size = 0x8, scoped, tag = 'scoped memory for tpu_custom_call.1']
    %14 = vsyncpa [#allocation3], 0
    %s15 = scalar_lea.sflag [#allocation3], 1
    %16 = vsyncpa %s15, 0
    loop: start=0, step=1, limit=6
    $region2: #{tpu_custom_call.1} parent=1 // loop_pre_header
      _
    $region3: #{tpu_custom_call.1} parent=1 // loop_header
      %s18 = sphi 0, %s22
      %p19 = scmp.ge.s32.totalorder %s18, 6
      %s28 = sphi 0, %s30
      %s31 = sphi 0, %s28
      %s32 = sphi 0, %s31
      %s48 = sphi 0, %s32
      %s52 = sphi 0, %s52
      %s54 = sphi 0, %s52
      %s55 = sphi 0, %s54
      %s69 = sphi 0, %s55
      %s73 = sphi 0, %s73
      %s75 = sphi 0, %s73
      %s76 = sphi 0, %s75
      %s90 = sphi 0, %s76
      %s94 = sphi 0, %s94
      %s96 = sphi 0, %s94
      %s97 = sphi 0, %s96
      %s111 = sphi 0, %s97
      %s115 = sphi 0, %s115
      %s117 = sphi 0, %s115
      %s118 = sphi 0, %s117
      %s132 = sphi 0, %s118
      %s136 = sphi 0, %s136
      %s138 = sphi 0, %s136
      %s139 = sphi 0, %s138
      %s153 = sphi 0, %s139
      %s157 = sphi 0, %s157
      %s159 = sphi 0, %s157
      %s160 = sphi 0, %s159
      %s174 = sphi 0, %s160
      %s178 = sphi 0, %s178
      %s180 = sphi 0, %s178
      %s181 = sphi 0, %s180
      %s195 = sphi 0, %s181
      %s199 = sphi 0, %s199
      %s201 = sphi 0, %s199
      %s202 = sphi 0, %s201
      %s216 = sphi 0, %s202
      %s222 = sphi 0, %s224
      %s225 = sphi 0, %s222
      %s226 = sphi 0, %s225
      %s242 = sphi 0, %s226
    $region4: #{tpu_custom_call.1} parent=1 // loop_header_branch
      %21 = sbr.rel (%p19) target = $region8
    $region5: #{tpu_custom_call.1} parent=1 // loop_body
      %s23 = ssub.s32 %s18, 1
      %s24 = ssub.s32 %s18, 2
      %s25 = sadd.s32 %s18, 1
      %s26 = ssub.s32 %s18, %s25
      %p27 = scmp.eq.s32.totalorder %s26, 0
      %s29 = sadd.s32 %s28, 1
      %s30 = scalar_select %p27, %s28, %s29
      %p33 = pneg %p27
      %p34 = scmp.eq.s32.totalorder %s18, 3
      %p35 = por %p33, %p34
      %p36 = scmp.ne.s32.totalorder %s28, %s31
      %p37 = scmp.eq.s32.totalorder %s18, 0
      %p38 = por %p36, %p37
      %p39 = scmp.ne.s32.totalorder %s28, %s31
      %p40 = scmp.eq.s32.totalorder %s23, 3
      %p41 = por %p39, %p40
      %p42 = scmp.ne.s32.totalorder %s31, %s32
      %p43 = scmp.eq.s32.totalorder %s23, 0
      %p44 = por %p42, %p43
      %p45 = scmp.ne.s32.totalorder %s31, %s32
      %p46 = scmp.eq.s32.totalorder %s24, 3
      %p47 = por %p45, %p46
      %p49 = scmp.ne.s32.totalorder %s32, %s48
      %p50 = scmp.eq.s32.totalorder %s24, 0
      %p51 = por %p49, %p50
      %s53 = sadd.s32 %s52, 1
      %p56 = scmp.eq.s32.totalorder %s18, 3
      %p57 = scmp.ne.s32.totalorder %s52, %s54
      %p58 = scmp.eq.s32.totalorder %s18, 0
      %p59 = por %p57, %p58
      %p60 = scmp.ne.s32.totalorder %s52, %s54
      %p61 = scmp.eq.s32.totalorder %s23, 3
      %p62 = por %p60, %p61
      %p63 = scmp.ne.s32.totalorder %s54, %s55
      %p64 = scmp.eq.s32.totalorder %s23, 0
      %p65 = por %p63, %p64
      %p66 = scmp.ne.s32.totalorder %s54, %s55
      %p67 = scmp.eq.s32.totalorder %s24, 3
      %p68 = por %p66, %p67
      %p70 = scmp.ne.s32.totalorder %s55, %s69
      %p71 = scmp.eq.s32.totalorder %s24, 0
      %p72 = por %p70, %p71
      %s74 = sadd.s32 %s73, 1
      %p77 = scmp.eq.s32.totalorder %s18, 3
      %p78 = scmp.ne.s32.totalorder %s73, %s75
      %p79 = scmp.eq.s32.totalorder %s18, 0
      %p80 = por %p78, %p79
      %p81 = scmp.ne.s32.totalorder %s73, %s75
      %p82 = scmp.eq.s32.totalorder %s23, 3
      %p83 = por %p81, %p82
      %p84 = scmp.ne.s32.totalorder %s75, %s76
      %p85 = scmp.eq.s32.totalorder %s23, 0
      %p86 = por %p84, %p85
      %p87 = scmp.ne.s32.totalorder %s75, %s76
      %p88 = scmp.eq.s32.totalorder %s24, 3
      %p89 = por %p87, %p88
      %p91 = scmp.ne.s32.totalorder %s76, %s90
      %p92 = scmp.eq.s32.totalorder %s24, 0
      %p93 = por %p91, %p92
      %s95 = sadd.s32 %s94, 1
      %p98 = scmp.eq.s32.totalorder %s18, 3
      %p99 = scmp.ne.s32.totalorder %s94, %s96
      %p100 = scmp.eq.s32.totalorder %s18, 0
      %p101 = por %p99, %p100
      %p102 = scmp.ne.s32.totalorder %s94, %s96
      %p103 = scmp.eq.s32.totalorder %s23, 3
      %p104 = por %p102, %p103
      %p105 = scmp.ne.s32.totalorder %s96, %s97
      %p106 = scmp.eq.s32.totalorder %s23, 0
      %p107 = por %p105, %p106
      %p108 = scmp.ne.s32.totalorder %s96, %s97
      %p109 = scmp.eq.s32.totalorder %s24, 3
      %p110 = por %p108, %p109
      %p112 = scmp.ne.s32.totalorder %s97, %s111
      %p113 = scmp.eq.s32.totalorder %s24, 0
      %p114 = por %p112, %p113
      %s116 = sadd.s32 %s115, 1
      %p119 = scmp.eq.s32.totalorder %s18, 3
      %p120 = scmp.ne.s32.totalorder %s115, %s117
      %p121 = scmp.eq.s32.totalorder %s18, 0
      %p122 = por %p120, %p121
      %p123 = scmp.ne.s32.totalorder %s115, %s117
      %p124 = scmp.eq.s32.totalorder %s23, 3
      %p125 = por %p123, %p124
      %p126 = scmp.ne.s32.totalorder %s117, %s118
      %p127 = scmp.eq.s32.totalorder %s23, 0
      %p128 = por %p126, %p127
      %p129 = scmp.ne.s32.totalorder %s117, %s118
      %p130 = scmp.eq.s32.totalorder %s24, 3
      %p131 = por %p129, %p130
      %p133 = scmp.ne.s32.totalorder %s118, %s132
      %p134 = scmp.eq.s32.totalorder %s24, 0
      %p135 = por %p133, %p134
      %s137 = sadd.s32 %s136, 1
      %p140 = scmp.eq.s32.totalorder %s18, 3
      %p141 = scmp.ne.s32.totalorder %s136, %s138
      %p142 = scmp.eq.s32.totalorder %s18, 0
      %p143 = por %p141, %p142
      %p144 = scmp.ne.s32.totalorder %s136, %s138
      %p145 = scmp.eq.s32.totalorder %s23, 3
      %p146 = por %p144, %p145
      %p147 = scmp.ne.s32.totalorder %s138, %s139
      %p148 = scmp.eq.s32.totalorder %s23, 0
      %p149 = por %p147, %p148
      %p150 = scmp.ne.s32.totalorder %s138, %s139
      %p151 = scmp.eq.s32.totalorder %s24, 3
      %p152 = por %p150, %p151
      %p154 = scmp.ne.s32.totalorder %s139, %s153
      %p155 = scmp.eq.s32.totalorder %s24, 0
      %p156 = por %p154, %p155
      %s158 = sadd.s32 %s157, 1
      %p161 = scmp.eq.s32.totalorder %s18, 3
      %p162 = scmp.ne.s32.totalorder %s157, %s159
      %p163 = scmp.eq.s32.totalorder %s18, 0
      %p164 = por %p162, %p163
      %p165 = scmp.ne.s32.totalorder %s157, %s159
      %p166 = scmp.eq.s32.totalorder %s23, 3
      %p167 = por %p165, %p166
      %p168 = scmp.ne.s32.totalorder %s159, %s160
      %p169 = scmp.eq.s32.totalorder %s23, 0
      %p170 = por %p168, %p169
      %p171 = scmp.ne.s32.totalorder %s159, %s160
      %p172 = scmp.eq.s32.totalorder %s24, 3
      %p173 = por %p171, %p172
      %p175 = scmp.ne.s32.totalorder %s160, %s174
      %p176 = scmp.eq.s32.totalorder %s24, 0
      %p177 = por %p175, %p176
      %s179 = sadd.s32 %s178, 1
      %p182 = scmp.eq.s32.totalorder %s18, 3
      %p183 = scmp.ne.s32.totalorder %s178, %s180
      %p184 = scmp.eq.s32.totalorder %s18, 0
      %p185 = por %p183, %p184
      %p186 = scmp.ne.s32.totalorder %s178, %s180
      %p187 = scmp.eq.s32.totalorder %s23, 3
      %p188 = por %p186, %p187
      %p189 = scmp.ne.s32.totalorder %s180, %s181
      %p190 = scmp.eq.s32.totalorder %s23, 0
      %p191 = por %p189, %p190
      %p192 = scmp.ne.s32.totalorder %s180, %s181
      %p193 = scmp.eq.s32.totalorder %s24, 3
      %p194 = por %p192, %p193
      %p196 = scmp.ne.s32.totalorder %s181, %s195
      %p197 = scmp.eq.s32.totalorder %s24, 0
      %p198 = por %p196, %p197
      %s200 = sadd.s32 %s199, 1
      %p203 = scmp.eq.s32.totalorder %s18, 3
      %p204 = scmp.ne.s32.totalorder %s199, %s201
      %p205 = scmp.eq.s32.totalorder %s18, 0
      %p206 = por %p204, %p205
      %p207 = scmp.ne.s32.totalorder %s199, %s201
      %p208 = scmp.eq.s32.totalorder %s23, 3
      %p209 = por %p207, %p208
      %p210 = scmp.ne.s32.totalorder %s201, %s202
      %p211 = scmp.eq.s32.totalorder %s23, 0
      %p212 = por %p210, %p211
      %p213 = scmp.ne.s32.totalorder %s201, %s202
      %p214 = scmp.eq.s32.totalorder %s24, 3
      %p215 = por %p213, %p214
      %p217 = scmp.ne.s32.totalorder %s202, %s216
      %p218 = scmp.eq.s32.totalorder %s24, 0
      %p219 = por %p217, %p218
      %s220 = ssub.s32 %s18, %s25
      %p221 = scmp.eq.s32.totalorder %s220, 0
      %s223 = sadd.s32 %s222, 1
      %s224 = scalar_select %p221, %s222, %s223
      %p227 = pneg %p221
      %p228 = scmp.eq.s32.totalorder %s18, 3
      %p229 = por %p227, %p228
      %p230 = scmp.ne.s32.totalorder %s222, %s225
      %p231 = scmp.eq.s32.totalorder %s18, 0
      %p232 = por %p230, %p231
      %p233 = scmp.ne.s32.totalorder %s222, %s225
      %p234 = scmp.eq.s32.totalorder %s23, 3
      %p235 = por %p233, %p234
      %p236 = scmp.ne.s32.totalorder %s225, %s226
      %p237 = scmp.eq.s32.totalorder %s23, 0
      %p238 = por %p236, %p237
      %p239 = scmp.ne.s32.totalorder %s225, %s226
      %p240 = scmp.eq.s32.totalorder %s24, 3
      %p241 = por %p239, %p240
      %p243 = scmp.ne.s32.totalorder %s226, %s242
      %p244 = scmp.eq.s32.totalorder %s24, 0
      %p245 = por %p243, %p244
      %p246 = scmp.le.s32.totalorder 1, %s18
      %p247 = scmp.lt.s32.totalorder %s18, 5
      %p248 = pnand %p246, %p247
      %p249 = pneg %p248
      // Predicated region
      $region9: #{tpu_custom_call.1} parent=5 // pred_check
        _
      $region10: #{tpu_custom_call.1} parent=5 // pred_check_branch
        %251 = sbr.rel (%p248) target = $region12
      $region11: #{tpu_custom_call.1} parent=5 // pred_region
        %s252 = ssub.s32 %s18, 1
        // Predicated region
        $region13: #{tpu_custom_call.1} parent=11 // pred_check
          %p253 = pneg %p65
        $region14: #{tpu_custom_call.1} parent=11 // pred_check_branch
          %255 = sbr.rel (%p253) target = $region16
        $region15: #{tpu_custom_call.1} parent=11 // pred_region
          _
        $region16: #{tpu_custom_call.1} parent=11 // pred_fallthru
          _
        // Predicated region
        $region17: #{tpu_custom_call.1} parent=11 // pred_check
          %p256 = pneg %p86
        $region18: #{tpu_custom_call.1} parent=11 // pred_check_branch
          %258 = sbr.rel (%p256) target = $region20
        $region19: #{tpu_custom_call.1} parent=11 // pred_region
          _
        $region20: #{tpu_custom_call.1} parent=11 // pred_fallthru
          _
        // Predicated region
        $region21: #{tpu_custom_call.1} parent=11 // pred_check
          %p259 = pneg %p107
        $region22: #{tpu_custom_call.1} parent=11 // pred_check_branch
          %261 = sbr.rel (%p259) target = $region24
        $region23: #{tpu_custom_call.1} parent=11 // pred_region
          _
        $region24: #{tpu_custom_call.1} parent=11 // pred_fallthru
          _
        // Predicated region
        $region25: #{tpu_custom_call.1} parent=11 // pred_check
          %p262 = pneg %p128
        $region26: #{tpu_custom_call.1} parent=11 // pred_check_branch
          %264 = sbr.rel (%p262) target = $region28
        $region27: #{tpu_custom_call.1} parent=11 // pred_region
          _
        $region28: #{tpu_custom_call.1} parent=11 // pred_fallthru
          _
        // Predicated region
        $region29: #{tpu_custom_call.1} parent=11 // pred_check
          %p265 = pneg %p149
        $region30: #{tpu_custom_call.1} parent=11 // pred_check_branch
          %267 = sbr.rel (%p265) target = $region32
        $region31: #{tpu_custom_call.1} parent=11 // pred_region
          _
        $region32: #{tpu_custom_call.1} parent=11 // pred_fallthru
          _
        // Predicated region
        $region33: #{tpu_custom_call.1} parent=11 // pred_check
          %p268 = pneg %p170
        $region34: #{tpu_custom_call.1} parent=11 // pred_check_branch
          %270 = sbr.rel (%p268) target = $region36
        $region35: #{tpu_custom_call.1} parent=11 // pred_region
          _
        $region36: #{tpu_custom_call.1} parent=11 // pred_fallthru
          _
        // Predicated region
        $region37: #{tpu_custom_call.1} parent=11 // pred_check
          %p271 = pneg %p191
        $region38: #{tpu_custom_call.1} parent=11 // pred_check_branch
          %273 = sbr.rel (%p271) target = $region40
        $region39: #{tpu_custom_call.1} parent=11 // pred_region
          _
        $region40: #{tpu_custom_call.1} parent=11 // pred_fallthru
          _
        // Predicated region
        $region41: #{tpu_custom_call.1} parent=11 // pred_check
          %p274 = pneg %p212
        $region42: #{tpu_custom_call.1} parent=11 // pred_check_branch
          %276 = sbr.rel (%p274) target = $region44
        $region43: #{tpu_custom_call.1} parent=11 // pred_region
          _
        $region44: #{tpu_custom_call.1} parent=11 // pred_fallthru
          _
      $region12: #{tpu_custom_call.1} parent=5 // pred_fallthru
        _
      %p277 = scmp.lt.s32.totalorder %s18, 4
      // Predicated region
      $region45: #{tpu_custom_call.1} parent=5 // pred_check
        %p278 = pneg %p277
      $region46: #{tpu_custom_call.1} parent=5 // pred_check_branch
        %280 = sbr.rel (%p278) target = $region48
      $region47: #{tpu_custom_call.1} parent=5 // pred_region
        // Predicated region
        $region49: #{tpu_custom_call.1} parent=47 // pred_check
          %p281 = pneg %p38
        $region50: #{tpu_custom_call.1} parent=47 // pred_check_branch
          %283 = sbr.rel (%p281) target = $region52
        $region51: #{tpu_custom_call.1} parent=47 // pred_region
          %s284 = smul.u32 16, %s18
          %p285 = scmp.lt.s32.totalorder %s284, 63
          %s286 = scalar_select %p285, %s284, 63
          %s287 = smul.addr %s286, 8
          %s288 = scalar_lea.vmem %s0, %s287
          %s289 = smul.u32 16, %s18
        $region52: #{tpu_custom_call.1} parent=47 // pred_fallthru
          _
      $region48: #{tpu_custom_call.1} parent=5 // pred_fallthru
        _
      %p290 = scmp.le.s32.totalorder 1, %s18
      %p291 = scmp.lt.s32.totalorder %s18, 5
      %p292 = pnand %p290, %p291
      %p293 = pneg %p292
      // Predicated region
      $region53: #{tpu_custom_call.1} parent=5 // pred_check
        _
      $region54: #{tpu_custom_call.1} parent=5 // pred_check_branch
        %295 = sbr.rel (%p292) target = $region56
      $region55: #{tpu_custom_call.1} parent=5 // pred_region
        %s296 = ssub.s32 %s18, 1
        %s297 = smul.u32 16, %s23
        %p298 = scmp.lt.s32.totalorder %s297, 63
        %s299 = scalar_select %p298, %s297, 63
        %s300 = smul.addr %s299, 8
        %s301 = scalar_lea.vmem %s0, %s300
        %p302 = pneg %p44
        %p303 = pneg %p41
        %p304 = pneg %p65
        %p305 = pneg %p62
        %p306 = pneg %p86
        %p307 = pneg %p83
        %p308 = pneg %p107
        %p309 = pneg %p104
        %p310 = pneg %p128
        %p311 = pneg %p125
        %p312 = pneg %p149
        %p313 = pneg %p146
        %p314 = pneg %p170
        %p315 = pneg %p167
        %p316 = pneg %p191
        %p317 = pneg %p188
        %p318 = pneg %p212
        %p319 = pneg %p209
        %p320 = pneg %p238
        %p321 = pneg %p235
        %s322 = sand.u32 %s225, 1
        %s323 = scalar_lea.sflag [#allocation3], %s322
        %s324 = sand.u32 %s225, 1
        %s325 = smul.addr %s324, 128
        %s326 = scalar_lea.vmem [#allocation2], %s325
        %s327 = smul.u32 16, %s23
        %p328 = scmp.lt.s32.totalorder %s327, 63
        %s329 = scalar_select %p328, %s327, 63
        %s330 = smul.addr %s329, 8
        %s331 = scalar_lea.vmem %s0, %s330
        %s332 = smul.u32 16, %s23
        %s333 = smul.u32 16, %s23
        %v335 = vld [vmem:[%s331] sm:$0xff]
        %v336 = vld [vmem:[%s331 + $0x8] sm:$0xff]
        %v337 = vld [vmem:[%s331 + $0x10] sm:$0xff]
        %v338 = vld [vmem:[%s331 + $0x18] sm:$0xff]
        %v339 = vld [vmem:[%s331 + $0x20] sm:$0xff]
        %v340 = vld [vmem:[%s331 + $0x28] sm:$0xff]
        %v341 = vld [vmem:[%s331 + $0x30] sm:$0xff]
        %v342 = vld [vmem:[%s331 + $0x38] sm:$0xff]
        %v343 = vld [vmem:[%s331 + $0x40] sm:$0xff]
        %v344 = vld [vmem:[%s331 + $0x48] sm:$0xff]
        %v345 = vld [vmem:[%s331 + $0x50] sm:$0xff]
        %v346 = vld [vmem:[%s331 + $0x58] sm:$0xff]
        %v347 = vld [vmem:[%s331 + $0x60] sm:$0xff]
        %v348 = vld [vmem:[%s331 + $0x68] sm:$0xff]
        %v349 = vld [vmem:[%s331 + $0x70] sm:$0xff]
        %v350 = vld [vmem:[%s331 + $0x78] sm:$0xff]
        %v351 = vld [vmem:[%s1] sm:$0xff]
        %v352 = vld [vmem:[%s1 + $0x8] sm:$0xff]
        %v353 = vld [vmem:[%s2] sm:$0x1]
        %v355 = vperm.slane %v353, 0
        %vm357 = vcmask 130048
        %v359 = vsel %vm357, %v335, 0
        %v362 = vsel %vm357, %v336, 0
        %v365 = vsel %vm357, %v337, 0
        %v368 = vsel %vm357, %v338, 0
        %v371 = vsel %vm357, %v339, 0
        %v374 = vsel %vm357, %v340, 0
        %v377 = vsel %vm357, %v341, 0
        %v380 = vsel %vm357, %v342, 0
        %v383 = vsel %vm357, %v343, 0
        %v386 = vsel %vm357, %v344, 0
        %v389 = vsel %vm357, %v345, 0
        %v392 = vsel %vm357, %v346, 0
        %v395 = vsel %vm357, %v347, 0
        %v398 = vsel %vm357, %v348, 0
        %v401 = vsel %vm357, %v349, 0
        %v404 = vsel %vm357, %v350, 0
        %406 = vmatpush.msra.mxu0 0.0
        %407 = vmatpush.msra.mxu0 0.0
        %408 = vmatpush.msra.mxu0 0.0
        %409 = vmatpush.msra.mxu0 0.0
        %410 = vmatpush.msra.mxu0 0.0
        %411 = vmatpush.msra.mxu0 0.0
        %412 = vmatpush.msra.mxu0 0.0
        %413 = vmatpush.msra.mxu0 0.0
        %414 = vmatpush.msra.mxu0 0.0
        %415 = vmatpush.msra.mxu0 0.0
        %416 = vmatpush.msra.mxu0 0.0
        %417 = vmatpush.msra.mxu0 0.0
        %418 = vmatpush.msra.mxu0 0.0
        %419 = vmatpush.msra.mxu0 0.0
        %420 = vmatpush.msra.mxu0 %v352
        %421 = vmatpush.msra.mxu0 %v351
        %422 = vmatmul.f32.gmra.mxu0 %v359
        %v423 = vpop.f32.mrf.mxu0
        %v424 = vadd.f32 %v355, %v423
        %425 = vmatmul.f32.gmra.mxu0 %v362
        %v426 = vpop.f32.mrf.mxu0
        %v427 = vadd.f32 %v355, %v426
        %428 = vmatmul.f32.gmra.mxu0 %v365
        %v429 = vpop.f32.mrf.mxu0
        %v430 = vadd.f32 %v355, %v429
        %431 = vmatmul.f32.gmra.mxu0 %v368
        %v432 = vpop.f32.mrf.mxu0
        %v433 = vadd.f32 %v355, %v432
        %434 = vmatmul.f32.gmra.mxu0 %v371
        %v435 = vpop.f32.mrf.mxu0
        %v436 = vadd.f32 %v355, %v435
        %437 = vmatmul.f32.gmra.mxu0 %v374
        %v438 = vpop.f32.mrf.mxu0
        %v439 = vadd.f32 %v355, %v438
        %440 = vmatmul.f32.gmra.mxu0 %v377
        %v441 = vpop.f32.mrf.mxu0
        %v442 = vadd.f32 %v355, %v441
        %443 = vmatmul.f32.gmra.mxu0 %v380
        %v444 = vpop.f32.mrf.mxu0
        %v445 = vadd.f32 %v355, %v444
        %446 = vmatmul.f32.gmra.mxu0 %v383
        %v447 = vpop.f32.mrf.mxu0
        %v448 = vadd.f32 %v355, %v447
        %449 = vmatmul.f32.gmra.mxu0 %v386
        %v450 = vpop.f32.mrf.mxu0
        %v451 = vadd.f32 %v355, %v450
        %452 = vmatmul.f32.gmra.mxu0 %v389
        %v453 = vpop.f32.mrf.mxu0
        %v454 = vadd.f32 %v355, %v453
        %455 = vmatmul.f32.gmra.mxu0 %v392
        %v456 = vpop.f32.mrf.mxu0
        %v457 = vadd.f32 %v355, %v456
        %458 = vmatmul.f32.gmra.mxu0 %v395
        %v459 = vpop.f32.mrf.mxu0
        %v460 = vadd.f32 %v355, %v459
        %461 = vmatmul.f32.gmra.mxu0 %v398
        %v462 = vpop.f32.mrf.mxu0
        %v463 = vadd.f32 %v355, %v462
        %464 = vmatmul.f32.gmra.mxu0 %v401
        %v465 = vpop.f32.mrf.mxu0
        %v466 = vadd.f32 %v355, %v465
        %467 = vmatmul.f32.gmra.mxu0 %v404
        %v468 = vpop.f32.mrf.mxu0
        %v469 = vadd.f32 %v355, %v468
        %470 = vdwg.mxu0
        %v471 = vmax.f32 %v424, 0.0
        %v472 = vmax.f32 %v427, 0.0
        %v473 = vmax.f32 %v430, 0.0
        %v474 = vmax.f32 %v433, 0.0
        %v475 = vmax.f32 %v436, 0.0
        %v476 = vmax.f32 %v439, 0.0
        %v477 = vmax.f32 %v442, 0.0
        %v478 = vmax.f32 %v445, 0.0
        %v479 = vmax.f32 %v448, 0.0
        %v480 = vmax.f32 %v451, 0.0
        %v481 = vmax.f32 %v454, 0.0
        %v482 = vmax.f32 %v457, 0.0
        %v483 = vmax.f32 %v460, 0.0
        %v484 = vmax.f32 %v463, 0.0
        %v485 = vmax.f32 %v466, 0.0
        %v486 = vmax.f32 %v469, 0.0
        %v487 = vld [vmem:[%s3] sm:$0xff]
        %v488 = vld [vmem:[%s3 + $0x8] sm:$0xff]
        %v489 = vld [vmem:[%s3 + $0x10] sm:$0xff]
        %v490 = vld [vmem:[%s3 + $0x18] sm:$0xff]
        %v491 = vld [vmem:[%s3 + $0x20] sm:$0xff]
        %v492 = vld [vmem:[%s3 + $0x28] sm:$0xff]
        %v493 = vld [vmem:[%s3 + $0x30] sm:$0xff]
        %v494 = vld [vmem:[%s3 + $0x38] sm:$0xff]
        %v495 = vld [vmem:[%s4] sm:$0x3]
        %v497 = vperm.slane %v495, 0
        %v498 = vperm.slane %v495, 1
        %vm501 = vcmask 261120
        %v503 = vsel %vm501, %v471, 0
        %v506 = vsel %vm501, %v472, 0
        %v509 = vsel %vm501, %v473, 0
        %v512 = vsel %vm501, %v474, 0
        %v515 = vsel %vm501, %v475, 0
        %v518 = vsel %vm501, %v476, 0
        %v521 = vsel %vm501, %v477, 0
        %v524 = vsel %vm501, %v478, 0
        %v527 = vsel %vm501, %v479, 0
        %v530 = vsel %vm501, %v480, 0
        %v533 = vsel %vm501, %v481, 0
        %v536 = vsel %vm501, %v482, 0
        %v539 = vsel %vm501, %v483, 0
        %v542 = vsel %vm501, %v484, 0
        %v545 = vsel %vm501, %v485, 0
        %v548 = vsel %vm501, %v486, 0
        %550 = vmatpush.msra.mxu0 0.0
        %551 = vmatpush.msra.mxu0 0.0
        %552 = vmatpush.msra.mxu0 0.0
        %553 = vmatpush.msra.mxu0 0.0
        %554 = vmatpush.msra.mxu0 0.0
        %555 = vmatpush.msra.mxu0 0.0
        %556 = vmatpush.msra.mxu0 0.0
        %557 = vmatpush.msra.mxu0 0.0
        %558 = vmatpush.msra.mxu0 0.0
        %559 = vmatpush.msra.mxu0 0.0
        %560 = vmatpush.msra.mxu0 0.0
        %561 = vmatpush.msra.mxu0 0.0
        %562 = vmatpush.msra.mxu0 %v493
        %563 = vmatpush.msra.mxu0 %v491
        %564 = vmatpush.msra.mxu0 %v489
        %565 = vmatpush.msra.mxu0 %v487
        %566 = vmatmul.f32.gmra.mxu0 %v503
        %v567 = vpop.f32.mrf.mxu0
        %v568 = vadd.f32 %v497, %v567
        %569 = vmatmul.f32.gmra.mxu0 %v506
        %v570 = vpop.f32.mrf.mxu0
        %v571 = vadd.f32 %v497, %v570
        %572 = vmatmul.f32.gmra.mxu0 %v509
        %v573 = vpop.f32.mrf.mxu0
        %v574 = vadd.f32 %v497, %v573
        %575 = vmatmul.f32.gmra.mxu0 %v512
        %v576 = vpop.f32.mrf.mxu0
        %v577 = vadd.f32 %v497, %v576
        %578 = vmatmul.f32.gmra.mxu0 %v515
        %v579 = vpop.f32.mrf.mxu0
        %v580 = vadd.f32 %v497, %v579
        %581 = vmatmul.f32.gmra.mxu0 %v518
        %v582 = vpop.f32.mrf.mxu0
        %v583 = vadd.f32 %v497, %v582
        %584 = vmatmul.f32.gmra.mxu0 %v521
        %v585 = vpop.f32.mrf.mxu0
        %v586 = vadd.f32 %v497, %v585
        %587 = vmatmul.f32.gmra.mxu0 %v524
        %v588 = vpop.f32.mrf.mxu0
        %v589 = vadd.f32 %v497, %v588
        %590 = vmatmul.f32.gmra.mxu0 %v527
        %v591 = vpop.f32.mrf.mxu0
        %v592 = vadd.f32 %v497, %v591
        %593 = vmatmul.f32.gmra.mxu0 %v530
        %v594 = vpop.f32.mrf.mxu0
        %v595 = vadd.f32 %v497, %v594
        %596 = vmatmul.f32.gmra.mxu0 %v533
        %v597 = vpop.f32.mrf.mxu0
        %v598 = vadd.f32 %v497, %v597
        %599 = vmatmul.f32.gmra.mxu0 %v536
        %v600 = vpop.f32.mrf.mxu0
        %v601 = vadd.f32 %v497, %v600
        %602 = vmatmul.f32.gmra.mxu0 %v539
        %v603 = vpop.f32.mrf.mxu0
        %v604 = vadd.f32 %v497, %v603
        %605 = vmatmul.f32.gmra.mxu0 %v542
        %v606 = vpop.f32.mrf.mxu0
        %v607 = vadd.f32 %v497, %v606
        %608 = vmatmul.f32.gmra.mxu0 %v545
        %v609 = vpop.f32.mrf.mxu0
        %v610 = vadd.f32 %v497, %v609
        %611 = vmatmul.f32.gmra.mxu0 %v548
        %v612 = vpop.f32.mrf.mxu0
        %v613 = vadd.f32 %v497, %v612
        %614 = vdwg.mxu0
        %615 = vmatpush.msra.mxu0 0.0
        %616 = vmatpush.msra.mxu0 0.0
        %617 = vmatpush.msra.mxu0 0.0
        %618 = vmatpush.msra.mxu0 0.0
        %619 = vmatpush.msra.mxu0 0.0
        %620 = vmatpush.msra.mxu0 0.0
        %621 = vmatpush.msra.mxu0 0.0
        %622 = vmatpush.msra.mxu0 0.0
        %623 = vmatpush.msra.mxu0 0.0
        %624 = vmatpush.msra.mxu0 0.0
        %625 = vmatpush.msra.mxu0 0.0
        %626 = vmatpush.msra.mxu0 0.0
        %627 = vmatpush.msra.mxu0 %v494
        %628 = vmatpush.msra.mxu0 %v492
        %629 = vmatpush.msra.mxu0 %v490
        %630 = vmatpush.msra.mxu0 %v488
        %631 = vmatmul.f32.gmra.mxu0 %v503
        %v632 = vpop.f32.mrf.mxu0
        %v633 = vadd.f32 %v498, %v632
        %634 = vmatmul.f32.gmra.mxu0 %v506
        %v635 = vpop.f32.mrf.mxu0
        %v636 = vadd.f32 %v498, %v635
        %637 = vmatmul.f32.gmra.mxu0 %v509
        %v638 = vpop.f32.mrf.mxu0
        %v639 = vadd.f32 %v498, %v638
        %640 = vmatmul.f32.gmra.mxu0 %v512
        %v641 = vpop.f32.mrf.mxu0
        %v642 = vadd.f32 %v498, %v641
        %643 = vmatmul.f32.gmra.mxu0 %v515
        %v644 = vpop.f32.mrf.mxu0
        %v645 = vadd.f32 %v498, %v644
        %646 = vmatmul.f32.gmra.mxu0 %v518
        %v647 = vpop.f32.mrf.mxu0
        %v648 = vadd.f32 %v498, %v647
        %649 = vmatmul.f32.gmra.mxu0 %v521
        %v650 = vpop.f32.mrf.mxu0
        %v651 = vadd.f32 %v498, %v650
        %652 = vmatmul.f32.gmra.mxu0 %v524
        %v653 = vpop.f32.mrf.mxu0
        %v654 = vadd.f32 %v498, %v653
        %655 = vmatmul.f32.gmra.mxu0 %v527
        %v656 = vpop.f32.mrf.mxu0
        %v657 = vadd.f32 %v498, %v656
        %658 = vmatmul.f32.gmra.mxu0 %v530
        %v659 = vpop.f32.mrf.mxu0
        %v660 = vadd.f32 %v498, %v659
        %661 = vmatmul.f32.gmra.mxu0 %v533
        %v662 = vpop.f32.mrf.mxu0
        %v663 = vadd.f32 %v498, %v662
        %664 = vmatmul.f32.gmra.mxu0 %v536
        %v665 = vpop.f32.mrf.mxu0
        %v666 = vadd.f32 %v498, %v665
        %667 = vmatmul.f32.gmra.mxu0 %v539
        %v668 = vpop.f32.mrf.mxu0
        %v669 = vadd.f32 %v498, %v668
        %670 = vmatmul.f32.gmra.mxu0 %v542
        %v671 = vpop.f32.mrf.mxu0
        %v672 = vadd.f32 %v498, %v671
        %673 = vmatmul.f32.gmra.mxu0 %v545
        %v674 = vpop.f32.mrf.mxu0
        %v675 = vadd.f32 %v498, %v674
        %676 = vmatmul.f32.gmra.mxu0 %v548
        %v677 = vpop.f32.mrf.mxu0
        %v678 = vadd.f32 %v498, %v677
        %679 = vdwg.mxu0
        %v680 = vpack.c.bf16 %v336, %v335
        %v681 = vpack.c.bf16 %v338, %v337
        %v682 = vpack.c.bf16 %v340, %v339
        %v683 = vpack.c.bf16 %v342, %v341
        %v684 = vpack.c.bf16 %v344, %v343
        %v685 = vpack.c.bf16 %v346, %v345
        %v686 = vpack.c.bf16 %v348, %v347
        %v687 = vpack.c.bf16 %v350, %v349
        %v688 = vld [vmem:[%s5] sm:$0xff]
        %v689 = vld [vmem:[%s5 + $0x8] sm:$0xff]
        %v692 = vunpack.c.l.b16 %v688
        %v693 = vunpack.c.h.b16 %v688
        %v694 = vunpack.c.l.b16 %v689
        %v695 = vunpack.c.h.b16 %v689
        %v696 = vpack.c.b16 %v694, %v692
        %v697 = vpack.c.b16 %v695, %v693
        %v701 = vsel %vm357, %v680, 0
        %v704 = vsel %vm357, %v681, 0
        %v707 = vsel %vm357, %v682, 0
        %v710 = vsel %vm357, %v683, 0
        %v713 = vsel %vm357, %v684, 0
        %v716 = vsel %vm357, %v685, 0
        %v719 = vsel %vm357, %v686, 0
        %v722 = vsel %vm357, %v687, 0
        %724 = vmatpush.bf16.msra.mxu0 0
        %725 = vmatpush.bf16.msra.mxu0 0
        %726 = vmatpush.bf16.msra.mxu0 0
        %727 = vmatpush.bf16.msra.mxu0 0
        %728 = vmatpush.bf16.msra.mxu0 0
        %729 = vmatpush.bf16.msra.mxu0 0
        %730 = vmatpush.bf16.msra.mxu0 0
        %731 = vmatpush.bf16.msra.mxu0 %v696
        %732 = vmatmul.bf16.gmra.mxu0 %v701
        %v733 = vpop.f32.mrf.mxu0
        %v734 = vadd.f32 0.0, %v733
        %v735 = vpop.f32.mrf.mxu0
        %v736 = vadd.f32 0.0, %v735
        %737 = vmatmul.bf16.gmra.mxu0 %v704
        %v738 = vpop.f32.mrf.mxu0
        %v739 = vadd.f32 0.0, %v738
        %v740 = vpop.f32.mrf.mxu0
        %v741 = vadd.f32 0.0, %v740
        %742 = vmatmul.bf16.gmra.mxu0 %v707
        %v743 = vpop.f32.mrf.mxu0
        %v744 = vadd.f32 0.0, %v743
        %v745 = vpop.f32.mrf.mxu0
        %v746 = vadd.f32 0.0, %v745
        %747 = vmatmul.bf16.gmra.mxu0 %v710
        %v748 = vpop.f32.mrf.mxu0
        %v749 = vadd.f32 0.0, %v748
        %v750 = vpop.f32.mrf.mxu0
        %v751 = vadd.f32 0.0, %v750
        %752 = vmatmul.bf16.gmra.mxu0 %v713
        %v753 = vpop.f32.mrf.mxu0
        %v754 = vadd.f32 0.0, %v753
        %v755 = vpop.f32.mrf.mxu0
        %v756 = vadd.f32 0.0, %v755
        %757 = vmatmul.bf16.gmra.mxu0 %v716
        %v758 = vpop.f32.mrf.mxu0
        %v759 = vadd.f32 0.0, %v758
        %v760 = vpop.f32.mrf.mxu0
        %v761 = vadd.f32 0.0, %v760
        %762 = vmatmul.bf16.gmra.mxu0 %v719
        %v763 = vpop.f32.mrf.mxu0
        %v764 = vadd.f32 0.0, %v763
        %v765 = vpop.f32.mrf.mxu0
        %v766 = vadd.f32 0.0, %v765
        %767 = vmatmul.bf16.gmra.mxu0 %v722
        %v768 = vpop.f32.mrf.mxu0
        %v769 = vadd.f32 0.0, %v768
        %v770 = vpop.f32.mrf.mxu0
        %v771 = vadd.f32 0.0, %v770
        %772 = vdwg.mxu0
        %773 = vmatpush.bf16.msra.mxu0 0
        %774 = vmatpush.bf16.msra.mxu0 0
        %775 = vmatpush.bf16.msra.mxu0 0
        %776 = vmatpush.bf16.msra.mxu0 0
        %777 = vmatpush.bf16.msra.mxu0 0
        %778 = vmatpush.bf16.msra.mxu0 0
        %779 = vmatpush.bf16.msra.mxu0 0
        %780 = vmatpush.bf16.msra.mxu0 %v697
        %781 = vmatmul.bf16.gmra.mxu0 %v701
        %v782 = vpop.f32.mrf.mxu0
        %v783 = vadd.f32 0.0, %v782
        %v784 = vpop.f32.mrf.mxu0
        %v785 = vadd.f32 0.0, %v784
        %786 = vmatmul.bf16.gmra.mxu0 %v704
        %v787 = vpop.f32.mrf.mxu0
        %v788 = vadd.f32 0.0, %v787
        %v789 = vpop.f32.mrf.mxu0
        %v790 = vadd.f32 0.0, %v789
        %791 = vmatmul.bf16.gmra.mxu0 %v707
        %v792 = vpop.f32.mrf.mxu0
        %v793 = vadd.f32 0.0, %v792
        %v794 = vpop.f32.mrf.mxu0
        %v795 = vadd.f32 0.0, %v794
        %796 = vmatmul.bf16.gmra.mxu0 %v710
        %v797 = vpop.f32.mrf.mxu0
        %v798 = vadd.f32 0.0, %v797
        %v799 = vpop.f32.mrf.mxu0
        %v800 = vadd.f32 0.0, %v799
        %801 = vmatmul.bf16.gmra.mxu0 %v713
        %v802 = vpop.f32.mrf.mxu0
        %v803 = vadd.f32 0.0, %v802
        %v804 = vpop.f32.mrf.mxu0
        %v805 = vadd.f32 0.0, %v804
        %806 = vmatmul.bf16.gmra.mxu0 %v716
        %v807 = vpop.f32.mrf.mxu0
        %v808 = vadd.f32 0.0, %v807
        %v809 = vpop.f32.mrf.mxu0
        %v810 = vadd.f32 0.0, %v809
        %811 = vmatmul.bf16.gmra.mxu0 %v719
        %v812 = vpop.f32.mrf.mxu0
        %v813 = vadd.f32 0.0, %v812
        %v814 = vpop.f32.mrf.mxu0
        %v815 = vadd.f32 0.0, %v814
        %816 = vmatmul.bf16.gmra.mxu0 %v722
        %v817 = vpop.f32.mrf.mxu0
        %v818 = vadd.f32 0.0, %v817
        %v819 = vpop.f32.mrf.mxu0
        %v820 = vadd.f32 0.0, %v819
        %821 = vdwg.mxu0
        %v822 = vld [vmem:[%s6] sm:$0xff]
        %v823 = vld [vmem:[%s6 + $0x8] sm:$0xff]
        %v826 = vunpack.c.l.b16 %v822
        %v827 = vunpack.c.h.b16 %v822
        %v828 = vunpack.c.l.b16 %v823
        %v829 = vunpack.c.h.b16 %v823
        %v830 = vpack.c.b16 %v828, %v826
        %v831 = vpack.c.b16 %v829, %v827
        %834 = vmatpush.bf16.msra.mxu0 0
        %835 = vmatpush.bf16.msra.mxu0 0
        %836 = vmatpush.bf16.msra.mxu0 0
        %837 = vmatpush.bf16.msra.mxu0 0
        %838 = vmatpush.bf16.msra.mxu0 0
        %839 = vmatpush.bf16.msra.mxu0 0
        %840 = vmatpush.bf16.msra.mxu0 0
        %841 = vmatpush.bf16.msra.mxu0 %v830
        %842 = vmatmul.bf16.gmra.mxu0 %v701
        %v843 = vpop.f32.mrf.mxu0
        %v844 = vadd.f32 0.0, %v843
        %v845 = vpop.f32.mrf.mxu0
        %v846 = vadd.f32 0.0, %v845
        %847 = vmatmul.bf16.gmra.mxu0 %v704
        %v848 = vpop.f32.mrf.mxu0
        %v849 = vadd.f32 0.0, %v848
        %v850 = vpop.f32.mrf.mxu0
        %v851 = vadd.f32 0.0, %v850
        %852 = vmatmul.bf16.gmra.mxu0 %v707
        %v853 = vpop.f32.mrf.mxu0
        %v854 = vadd.f32 0.0, %v853
        %v855 = vpop.f32.mrf.mxu0
        %v856 = vadd.f32 0.0, %v855
        %857 = vmatmul.bf16.gmra.mxu0 %v710
        %v858 = vpop.f32.mrf.mxu0
        %v859 = vadd.f32 0.0, %v858
        %v860 = vpop.f32.mrf.mxu0
        %v861 = vadd.f32 0.0, %v860
        %862 = vmatmul.bf16.gmra.mxu0 %v713
        %v863 = vpop.f32.mrf.mxu0
        %v864 = vadd.f32 0.0, %v863
        %v865 = vpop.f32.mrf.mxu0
        %v866 = vadd.f32 0.0, %v865
        %867 = vmatmul.bf16.gmra.mxu0 %v716
        %v868 = vpop.f32.mrf.mxu0
        %v869 = vadd.f32 0.0, %v868
        %v870 = vpop.f32.mrf.mxu0
        %v871 = vadd.f32 0.0, %v870
        %872 = vmatmul.bf16.gmra.mxu0 %v719
        %v873 = vpop.f32.mrf.mxu0
        %v874 = vadd.f32 0.0, %v873
        %v875 = vpop.f32.mrf.mxu0
        %v876 = vadd.f32 0.0, %v875
        %877 = vmatmul.bf16.gmra.mxu0 %v722
        %v878 = vpop.f32.mrf.mxu0
        %v879 = vadd.f32 0.0, %v878
        %v880 = vpop.f32.mrf.mxu0
        %v881 = vadd.f32 0.0, %v880
        %882 = vdwg.mxu0
        %883 = vmatpush.bf16.msra.mxu0 0
        %884 = vmatpush.bf16.msra.mxu0 0
        %885 = vmatpush.bf16.msra.mxu0 0
        %886 = vmatpush.bf16.msra.mxu0 0
        %887 = vmatpush.bf16.msra.mxu0 0
        %888 = vmatpush.bf16.msra.mxu0 0
        %889 = vmatpush.bf16.msra.mxu0 0
        %890 = vmatpush.bf16.msra.mxu0 %v831
        %891 = vmatmul.bf16.gmra.mxu0 %v701
        %v892 = vpop.f32.mrf.mxu0
        %v893 = vadd.f32 0.0, %v892
        %v894 = vpop.f32.mrf.mxu0
        %v895 = vadd.f32 0.0, %v894
        %896 = vmatmul.bf16.gmra.mxu0 %v704
        %v897 = vpop.f32.mrf.mxu0
        %v898 = vadd.f32 0.0, %v897
        %v899 = vpop.f32.mrf.mxu0
        %v900 = vadd.f32 0.0, %v899
        %901 = vmatmul.bf16.gmra.mxu0 %v707
        %v902 = vpop.f32.mrf.mxu0
        %v903 = vadd.f32 0.0, %v902
        %v904 = vpop.f32.mrf.mxu0
        %v905 = vadd.f32 0.0, %v904
        %906 = vmatmul.bf16.gmra.mxu0 %v710
        %v907 = vpop.f32.mrf.mxu0
        %v908 = vadd.f32 0.0, %v907
        %v909 = vpop.f32.mrf.mxu0
        %v910 = vadd.f32 0.0, %v909
        %911 = vmatmul.bf16.gmra.mxu0 %v713
        %v912 = vpop.f32.mrf.mxu0
        %v913 = vadd.f32 0.0, %v912
        %v914 = vpop.f32.mrf.mxu0
        %v915 = vadd.f32 0.0, %v914
        %916 = vmatmul.bf16.gmra.mxu0 %v716
        %v917 = vpop.f32.mrf.mxu0
        %v918 = vadd.f32 0.0, %v917
        %v919 = vpop.f32.mrf.mxu0
        %v920 = vadd.f32 0.0, %v919
        %921 = vmatmul.bf16.gmra.mxu0 %v719
        %v922 = vpop.f32.mrf.mxu0
        %v923 = vadd.f32 0.0, %v922
        %v924 = vpop.f32.mrf.mxu0
        %v925 = vadd.f32 0.0, %v924
        %926 = vmatmul.bf16.gmra.mxu0 %v722
        %v927 = vpop.f32.mrf.mxu0
        %v928 = vadd.f32 0.0, %v927
        %v929 = vpop.f32.mrf.mxu0
        %v930 = vadd.f32 0.0, %v929
        %931 = vdwg.mxu0
        %v932 = vld [vmem:[%s7] sm:$0x3]
        %v934 = vperm.slane %v932, 0
        %v935 = vperm.slane %v932, 1
        %vm938 = vcmp.eq.f32.partialorder %v844, %v934
        %vm939 = vcmp.eq.f32.partialorder %v893, %v935
        %vm940 = vcmp.eq.f32.partialorder %v846, %v934
        %vm941 = vcmp.eq.f32.partialorder %v895, %v935
        %vm942 = vcmp.eq.f32.partialorder %v849, %v934
        %vm943 = vcmp.eq.f32.partialorder %v898, %v935
        %vm944 = vcmp.eq.f32.partialorder %v851, %v934
        %vm945 = vcmp.eq.f32.partialorder %v900, %v935
        %vm946 = vcmp.eq.f32.partialorder %v854, %v934
        %vm947 = vcmp.eq.f32.partialorder %v903, %v935
        %vm948 = vcmp.eq.f32.partialorder %v856, %v934
        %vm949 = vcmp.eq.f32.partialorder %v905, %v935
        %vm950 = vcmp.eq.f32.partialorder %v859, %v934
        %vm951 = vcmp.eq.f32.partialorder %v908, %v935
        %vm952 = vcmp.eq.f32.partialorder %v861, %v934
        %vm953 = vcmp.eq.f32.partialorder %v910, %v935
        %vm954 = vcmp.eq.f32.partialorder %v864, %v934
        %vm955 = vcmp.eq.f32.partialorder %v913, %v935
        %vm956 = vcmp.eq.f32.partialorder %v866, %v934
        %vm957 = vcmp.eq.f32.partialorder %v915, %v935
        %vm958 = vcmp.eq.f32.partialorder %v869, %v934
        %vm959 = vcmp.eq.f32.partialorder %v918, %v935
        %vm960 = vcmp.eq.f32.partialorder %v871, %v934
        %vm961 = vcmp.eq.f32.partialorder %v920, %v935
        %vm962 = vcmp.eq.f32.partialorder %v874, %v934
        %vm963 = vcmp.eq.f32.partialorder %v923, %v935
        %vm964 = vcmp.eq.f32.partialorder %v876, %v934
        %vm965 = vcmp.eq.f32.partialorder %v925, %v935
        %vm966 = vcmp.eq.f32.partialorder %v879, %v934
        %vm967 = vcmp.eq.f32.partialorder %v928, %v935
        %vm968 = vcmp.eq.f32.partialorder %v881, %v934
        %vm969 = vcmp.eq.f32.partialorder %v930, %v935
        %v970 = vmul.f32 %v734, %v568
        %v971 = vmul.f32 %v783, %v633
        %v972 = vmul.f32 %v736, %v571
        %v973 = vmul.f32 %v785, %v636
        %v974 = vmul.f32 %v739, %v574
        %v975 = vmul.f32 %v788, %v639
        %v976 = vmul.f32 %v741, %v577
        %v977 = vmul.f32 %v790, %v642
        %v978 = vmul.f32 %v744, %v580
        %v979 = vmul.f32 %v793, %v645
        %v980 = vmul.f32 %v746, %v583
        %v981 = vmul.f32 %v795, %v648
        %v982 = vmul.f32 %v749, %v586
        %v983 = vmul.f32 %v798, %v651
        %v984 = vmul.f32 %v751, %v589
        %v985 = vmul.f32 %v800, %v654
        %v986 = vmul.f32 %v754, %v592
        %v987 = vmul.f32 %v803, %v657
        %v988 = vmul.f32 %v756, %v595
        %v989 = vmul.f32 %v805, %v660
        %v990 = vmul.f32 %v759, %v598
        %v991 = vmul.f32 %v808, %v663
        %v992 = vmul.f32 %v761, %v601
        %v993 = vmul.f32 %v810, %v666
        %v994 = vmul.f32 %v764, %v604
        %v995 = vmul.f32 %v813, %v669
        %v996 = vmul.f32 %v766, %v607
        %v997 = vmul.f32 %v815, %v672
        %v998 = vmul.f32 %v769, %v610
        %v999 = vmul.f32 %v818, %v675
        %v1000 = vmul.f32 %v771, %v613
        %v1001 = vmul.f32 %v820, %v678
        %v1002 = vsel %vm938, %v970, 0.0
        %v1003 = vsel %vm939, %v971, 0.0
        %v1004 = vsel %vm940, %v972, 0.0
        %v1005 = vsel %vm941, %v973, 0.0
        %v1006 = vsel %vm942, %v974, 0.0
        %v1007 = vsel %vm943, %v975, 0.0
        %v1008 = vsel %vm944, %v976, 0.0
        %v1009 = vsel %vm945, %v977, 0.0
        %v1010 = vsel %vm946, %v978, 0.0
        %v1011 = vsel %vm947, %v979, 0.0
        %v1012 = vsel %vm948, %v980, 0.0
        %v1013 = vsel %vm949, %v981, 0.0
        %v1014 = vsel %vm950, %v982, 0.0
        %v1015 = vsel %vm951, %v983, 0.0
        %v1016 = vsel %vm952, %v984, 0.0
        %v1017 = vsel %vm953, %v985, 0.0
        %v1018 = vsel %vm954, %v986, 0.0
        %v1019 = vsel %vm955, %v987, 0.0
        %v1020 = vsel %vm956, %v988, 0.0
        %v1021 = vsel %vm957, %v989, 0.0
        %v1022 = vsel %vm958, %v990, 0.0
        %v1023 = vsel %vm959, %v991, 0.0
        %v1024 = vsel %vm960, %v992, 0.0
        %v1025 = vsel %vm961, %v993, 0.0
        %v1026 = vsel %vm962, %v994, 0.0
        %v1027 = vsel %vm963, %v995, 0.0
        %v1028 = vsel %vm964, %v996, 0.0
        %v1029 = vsel %vm965, %v997, 0.0
        %v1030 = vsel %vm966, %v998, 0.0
        %v1031 = vsel %vm967, %v999, 0.0
        %v1032 = vsel %vm968, %v1000, 0.0
        %v1033 = vsel %vm969, %v1001, 0.0
        %v1034 = vld [vmem:[%s8] sm:$0xff]
        %v1035 = vld [vmem:[%s8 + $0x8] sm:$0xff]
        %v1036 = vld [vmem:[%s8 + $0x10] sm:$0xff]
        %v1037 = vld [vmem:[%s8 + $0x18] sm:$0xff]
        %v1038 = vld [vmem:[%s8 + $0x20] sm:$0xff]
        %v1039 = vld [vmem:[%s8 + $0x28] sm:$0xff]
        %v1040 = vld [vmem:[%s8 + $0x30] sm:$0xff]
        %v1041 = vld [vmem:[%s8 + $0x38] sm:$0xff]
        %v1042 = vld [vmem:[%s8 + $0x40] sm:$0xff]
        %v1043 = vld [vmem:[%s8 + $0x48] sm:$0xff]
        %v1044 = vld [vmem:[%s8 + $0x50] sm:$0xff]
        %v1045 = vld [vmem:[%s8 + $0x58] sm:$0xff]
        %v1046 = vld [vmem:[%s8 + $0x60] sm:$0xff]
        %v1047 = vld [vmem:[%s8 + $0x68] sm:$0xff]
        %v1048 = vld [vmem:[%s8 + $0x70] sm:$0xff]
        %v1049 = vld [vmem:[%s8 + $0x78] sm:$0xff]
        %v1050 = vld [vmem:[%s8 + $0x80] sm:$0xff]
        %v1051 = vld [vmem:[%s8 + $0x88] sm:$0xff]
        %v1052 = vld [vmem:[%s8 + $0x90] sm:$0xff]
        %v1053 = vld [vmem:[%s8 + $0x98] sm:$0xff]
        %v1054 = vld [vmem:[%s8 + $0xa0] sm:$0xff]
        %v1055 = vld [vmem:[%s8 + $0xa8] sm:$0xff]
        %v1056 = vld [vmem:[%s8 + $0xb0] sm:$0xff]
        %v1057 = vld [vmem:[%s8 + $0xb8] sm:$0xff]
        %v1058 = vld [vmem:[%s8 + $0xc0] sm:$0xff]
        %v1059 = vld [vmem:[%s8 + $0xc8] sm:$0xff]
        %v1060 = vld [vmem:[%s8 + $0xd0] sm:$0xff]
        %v1061 = vld [vmem:[%s8 + $0xd8] sm:$0xff]
        %v1062 = vld [vmem:[%s8 + $0xe0] sm:$0xff]
        %v1063 = vld [vmem:[%s8 + $0xe8] sm:$0xff]
        %v1064 = vld [vmem:[%s8 + $0xf0] sm:$0xff]
        %v1065 = vld [vmem:[%s8 + $0xf8] sm:$0xff]
        %1066 = vmatpush.msra.mxu0 %v1049
        %1067 = vmatpush.msra.mxu0 %v1048
        %1068 = vmatpush.msra.mxu0 %v1047
        %1069 = vmatpush.msra.mxu0 %v1046
        %1070 = vmatpush.msra.mxu0 %v1045
        %1071 = vmatpush.msra.mxu0 %v1044
        %1072 = vmatpush.msra.mxu0 %v1043
        %1073 = vmatpush.msra.mxu0 %v1042
        %1074 = vmatpush.msra.mxu0 %v1041
        %1075 = vmatpush.msra.mxu0 %v1040
        %1076 = vmatpush.msra.mxu0 %v1039
        %1077 = vmatpush.msra.mxu0 %v1038
        %1078 = vmatpush.msra.mxu0 %v1037
        %1079 = vmatpush.msra.mxu0 %v1036
        %1080 = vmatpush.msra.mxu0 %v1035
        %1081 = vmatpush.msra.mxu0 %v1034
        %1082 = vmatmul.f32.gmra.mxu0 %v1002
        %v1083 = vpop.f32.mrf.mxu0
        %v1084 = vadd.f32 0.0, %v1083
        %1085 = vmatmul.f32.gmra.mxu0 %v1004
        %v1086 = vpop.f32.mrf.mxu0
        %v1087 = vadd.f32 0.0, %v1086
        %1088 = vmatmul.f32.gmra.mxu0 %v1006
        %v1089 = vpop.f32.mrf.mxu0
        %v1090 = vadd.f32 0.0, %v1089
        %1091 = vmatmul.f32.gmra.mxu0 %v1008
        %v1092 = vpop.f32.mrf.mxu0
        %v1093 = vadd.f32 0.0, %v1092
        %1094 = vmatmul.f32.gmra.mxu0 %v1010
        %v1095 = vpop.f32.mrf.mxu0
        %v1096 = vadd.f32 0.0, %v1095
        %1097 = vmatmul.f32.gmra.mxu0 %v1012
        %v1098 = vpop.f32.mrf.mxu0
        %v1099 = vadd.f32 0.0, %v1098
        %1100 = vmatmul.f32.gmra.mxu0 %v1014
        %v1101 = vpop.f32.mrf.mxu0
        %v1102 = vadd.f32 0.0, %v1101
        %1103 = vmatmul.f32.gmra.mxu0 %v1016
        %v1104 = vpop.f32.mrf.mxu0
        %v1105 = vadd.f32 0.0, %v1104
        %1106 = vmatmul.f32.gmra.mxu0 %v1018
        %v1107 = vpop.f32.mrf.mxu0
        %v1108 = vadd.f32 0.0, %v1107
        %1109 = vmatmul.f32.gmra.mxu0 %v1020
        %v1110 = vpop.f32.mrf.mxu0
        %v1111 = vadd.f32 0.0, %v1110
        %1112 = vmatmul.f32.gmra.mxu0 %v1022
        %v1113 = vpop.f32.mrf.mxu0
        %v1114 = vadd.f32 0.0, %v1113
        %1115 = vmatmul.f32.gmra.mxu0 %v1024
        %v1116 = vpop.f32.mrf.mxu0
        %v1117 = vadd.f32 0.0, %v1116
        %1118 = vmatmul.f32.gmra.mxu0 %v1026
        %v1119 = vpop.f32.mrf.mxu0
        %v1120 = vadd.f32 0.0, %v1119
        %1121 = vmatmul.f32.gmra.mxu0 %v1028
        %v1122 = vpop.f32.mrf.mxu0
        %v1123 = vadd.f32 0.0, %v1122
        %1124 = vmatmul.f32.gmra.mxu0 %v1030
        %v1125 = vpop.f32.mrf.mxu0
        %v1126 = vadd.f32 0.0, %v1125
        %1127 = vmatmul.f32.gmra.mxu0 %v1032
        %v1128 = vpop.f32.mrf.mxu0
        %v1129 = vadd.f32 0.0, %v1128
        %1130 = vdwg.mxu0
        %1131 = vmatpush.msra.mxu0 %v1065
        %1132 = vmatpush.msra.mxu0 %v1064
        %1133 = vmatpush.msra.mxu0 %v1063
        %1134 = vmatpush.msra.mxu0 %v1062
        %1135 = vmatpush.msra.mxu0 %v1061
        %1136 = vmatpush.msra.mxu0 %v1060
        %1137 = vmatpush.msra.mxu0 %v1059
        %1138 = vmatpush.msra.mxu0 %v1058
        %1139 = vmatpush.msra.mxu0 %v1057
        %1140 = vmatpush.msra.mxu0 %v1056
        %1141 = vmatpush.msra.mxu0 %v1055
        %1142 = vmatpush.msra.mxu0 %v1054
        %1143 = vmatpush.msra.mxu0 %v1053
        %1144 = vmatpush.msra.mxu0 %v1052
        %1145 = vmatpush.msra.mxu0 %v1051
        %1146 = vmatpush.msra.mxu0 %v1050
        %1147 = vmatmul.f32.gmra.mxu0 %v1003
        %v1148 = vpop.f32.mrf.mxu0
        %v1149 = vadd.f32 %v1084, %v1148
        %1150 = vmatmul.f32.gmra.mxu0 %v1005
        %v1151 = vpop.f32.mrf.mxu0
        %v1152 = vadd.f32 %v1087, %v1151
        %1153 = vmatmul.f32.gmra.mxu0 %v1007
        %v1154 = vpop.f32.mrf.mxu0
        %v1155 = vadd.f32 %v1090, %v1154
        %1156 = vmatmul.f32.gmra.mxu0 %v1009
        %v1157 = vpop.f32.mrf.mxu0
        %v1158 = vadd.f32 %v1093, %v1157
        %1159 = vmatmul.f32.gmra.mxu0 %v1011
        %v1160 = vpop.f32.mrf.mxu0
        %v1161 = vadd.f32 %v1096, %v1160
        %1162 = vmatmul.f32.gmra.mxu0 %v1013
        %v1163 = vpop.f32.mrf.mxu0
        %v1164 = vadd.f32 %v1099, %v1163
        %1165 = vmatmul.f32.gmra.mxu0 %v1015
        %v1166 = vpop.f32.mrf.mxu0
        %v1167 = vadd.f32 %v1102, %v1166
        %1168 = vmatmul.f32.gmra.mxu0 %v1017
        %v1169 = vpop.f32.mrf.mxu0
        %v1170 = vadd.f32 %v1105, %v1169
        %1171 = vmatmul.f32.gmra.mxu0 %v1019
        %v1172 = vpop.f32.mrf.mxu0
        %v1173 = vadd.f32 %v1108, %v1172
        %1174 = vmatmul.f32.gmra.mxu0 %v1021
        %v1175 = vpop.f32.mrf.mxu0
        %v1176 = vadd.f32 %v1111, %v1175
        %1177 = vmatmul.f32.gmra.mxu0 %v1023
        %v1178 = vpop.f32.mrf.mxu0
        %v1179 = vadd.f32 %v1114, %v1178
        %1180 = vmatmul.f32.gmra.mxu0 %v1025
        %v1181 = vpop.f32.mrf.mxu0
        %v1182 = vadd.f32 %v1117, %v1181
        %1183 = vmatmul.f32.gmra.mxu0 %v1027
        %v1184 = vpop.f32.mrf.mxu0
        %v1185 = vadd.f32 %v1120, %v1184
        %1186 = vmatmul.f32.gmra.mxu0 %v1029
        %v1187 = vpop.f32.mrf.mxu0
        %v1188 = vadd.f32 %v1123, %v1187
        %1189 = vmatmul.f32.gmra.mxu0 %v1031
        %v1190 = vpop.f32.mrf.mxu0
        %v1191 = vadd.f32 %v1126, %v1190
        %1192 = vmatmul.f32.gmra.mxu0 %v1033
        %v1193 = vpop.f32.mrf.mxu0
        %v1194 = vadd.f32 %v1129, %v1193
        %1195 = vdwg.mxu0
        %1196 = vst [vmem:[%s326] sm:$0xff] %v1149
        %1197 = vst [vmem:[%s326 + $0x8] sm:$0xff] %v1152
        %1198 = vst [vmem:[%s326 + $0x10] sm:$0xff] %v1155
        %1199 = vst [vmem:[%s326 + $0x18] sm:$0xff] %v1158
        %1200 = vst [vmem:[%s326 + $0x20] sm:$0xff] %v1161
        %1201 = vst [vmem:[%s326 + $0x28] sm:$0xff] %v1164
        %1202 = vst [vmem:[%s326 + $0x30] sm:$0xff] %v1167
        %1203 = vst [vmem:[%s326 + $0x38] sm:$0xff] %v1170
        %1204 = vst [vmem:[%s326 + $0x40] sm:$0xff] %v1173
        %1205 = vst [vmem:[%s326 + $0x48] sm:$0xff] %v1176
        %1206 = vst [vmem:[%s326 + $0x50] sm:$0xff] %v1179
        %1207 = vst [vmem:[%s326 + $0x58] sm:$0xff] %v1182
        %1208 = vst [vmem:[%s326 + $0x60] sm:$0xff] %v1185
        %1209 = vst [vmem:[%s326 + $0x68] sm:$0xff] %v1188
        %1210 = vst [vmem:[%s326 + $0x70] sm:$0xff] %v1191
        %1211 = vst [vmem:[%s326 + $0x78] sm:$0xff] %v1194
        %s1212 = sand.u32 %s225, 1
        %s1213 = scalar_lea.sflag [#allocation3], %s1212
        %s1214 = sand.u32 %s225, 1
        %s1215 = smul.addr %s1214, 128
        %s1216 = scalar_lea.vmem [#allocation2], %s1215
        // Predicated region
        $region57: #{tpu_custom_call.1} parent=55 // pred_check
          %p1217 = pneg %p235
        $region58: #{tpu_custom_call.1} parent=55 // pred_check_branch
          %1219 = sbr.rel (%p1217) target = $region60
        $region59: #{tpu_custom_call.1} parent=55 // pred_region
          %s1220 = smul.u32 16, %s23
          %1222 = vsyncadd %s1213, 0
          %s1223 = smul.addr %s1220, 8
          %s1224 = scalar_lea.hbm %s9, %s1223
          %s1225 = sshll.u32 %s1216, 4
          %s1226 = int_to_ptr.vmem [resolvable:$true] %s1225
          %s1227 = sshll.u32 %s1224, 4
          %s1228 = int_to_ptr.hbm [resolvable:$true] %s1227
          %1233 = dma.vmem_to_hbm [thread:$0]  %s1226, 2048, %s1228, %s1213, 128, 128, 8
        $region60: #{tpu_custom_call.1} parent=55 // pred_fallthru
          _
      $region56: #{tpu_custom_call.1} parent=5 // pred_fallthru
        _
      %p1234 = scmp.le.s32.totalorder 2, %s18
      // Predicated region
      $region61: #{tpu_custom_call.1} parent=5 // pred_check
        %p1235 = pneg %p1234
      $region62: #{tpu_custom_call.1} parent=5 // pred_check_branch
        %1237 = sbr.rel (%p1235) target = $region64
      $region63: #{tpu_custom_call.1} parent=5 // pred_region
        %s1238 = ssub.s32 %s18, 2
        // Predicated region
        $region65: #{tpu_custom_call.1} parent=63 // pred_check
          %p1239 = pneg %p241
        $region66: #{tpu_custom_call.1} parent=63 // pred_check_branch
          %1241 = sbr.rel (%p1239) target = $region68
        $region67: #{tpu_custom_call.1} parent=63 // pred_region
          %s1242 = sand.u32 %s226, 1
          %s1243 = scalar_lea.sflag [#allocation3], %s1242
          %s1244 = sand.u32 %s226, 1
          %s1245 = smul.addr %s1244, 128
          %s1246 = scalar_lea.vmem [#allocation2], %s1245
          %1248 = dma.done %s1243, 2048
        $region68: #{tpu_custom_call.1} parent=63 // pred_fallthru
          _
      $region64: #{tpu_custom_call.1} parent=5 // pred_fallthru
        _
    $region6: #{tpu_custom_call.1} parent=1 // loop_footer
      %s22 = sadd.s32 1, %s18
    $region7: #{tpu_custom_call.1} parent=1 // loop_footer_branch
      %17 = sbr.rel target = $region3
    $region8: #{tpu_custom_call.1} parent=1 // loop_exit
      _
    %1249 = vsyncpa [#allocation3], 1
    %s1250 = scalar_lea.sflag [#allocation3], 1
    %1251 = vsyncpa %s1250, 1

</llo_original>
